<compile_context>
chip_gen: v6e
topology: v6e:2x2x1
jax: 0.10.0
libtpu: 0.0.40
codegen_flags: <defaults>
</compile_context>

<pallas_src>
import functools

import jax
import jax.numpy as jnp
import numpy as np
from jax.experimental import pallas as pl
from jax.experimental.pallas import tpu as pltpu

_LANE = 128      # lane width: S and H padded to multiples of this
_SUBLANE = 8


def _round_up(x, m):
    return ((x + m - 1) // m) * m


def pack_attention_params(wh_w, wh_b, ws_w, ws_b, wc_w, wc_b, v_w, v_b, *, h_pad):
    """Pack all nn.Linear parameters ONCE at model init (host-side numpy).

    Returns:
      w_slab : bf16 (2*h_pad, h_pad)  -- [w_h.weight.T ; w_s.weight.T], zero padded
      rows   : f32  (24, h_pad)       -- row 0 : w_c.weight[:, 0]
                                         row 8 : b_h + b_s + b_c (pre-summed)
                                         row 16: v.weight[0, :]
    Rows 0/8/16 are 8-sublane aligned so the single-row kernel views are free.
    v.bias is dropped: it shifts e_t uniformly along the softmax axis and
    cancels exactly (e_t is not an output of the module).
    """
    del v_b
    h = wh_w.shape[0]
    w_slab = np.zeros((2 * h_pad, h_pad), np.float32)
    w_slab[0:h, 0:h] = np.asarray(wh_w, np.float32).T
    w_slab[h_pad:h_pad + h, 0:h] = np.asarray(ws_w, np.float32).T
    rows = np.zeros((3 * _SUBLANE, h_pad), np.float32)
    rows[0, 0:h] = np.asarray(wc_w, np.float32)[:, 0]
    rows[_SUBLANE, 0:h] = (np.asarray(wh_b, np.float32)
                           + np.asarray(ws_b, np.float32)
                           + np.asarray(wc_b, np.float32))
    rows[2 * _SUBLANE, 0:h] = np.asarray(v_w, np.float32)[0, :]
    return jnp.asarray(w_slab, jnp.bfloat16), jnp.asarray(rows, jnp.float32)


def attention_kernel(enc_ref, dec_ref, cov_ref, w_ref, rows_ref,
                     attn_ref, sumcov_ref, *, valid_s):
    f32 = jnp.float32
    enc = enc_ref[...]                               # (tb, S_pad, H_pad) bf16
    tb, s_pad, h_pad = enc.shape
    dec = dec_ref[...]                               # (tb, H_pad) bf16
    cov = cov_ref[...]                               # (tb, S_pad) f32

    # Static, 8-sublane-aligned parameter views.
    w_h = w_ref[0:h_pad, :]                          # (H_pad, H_pad) bf16
    w_s = w_ref[h_pad:2 * h_pad, :]                  # (H_pad, H_pad) bf16
    w_c = rows_ref[0:1, :].reshape(1, 1, h_pad)      # f32
    b_a = rows_ref[8:9, :].reshape(1, 1, h_pad)      # f32 (b_h + b_s + b_c)
    v_w = rows_ref[16:17, :].reshape(1, 1, h_pad)    # f32

    # MXU matmuls: bf16 operands, f32 accumulation.
    enc_feat = jnp.dot(enc.reshape(tb * s_pad, h_pad), w_h,
                       preferred_element_type=f32).reshape(tb, s_pad, h_pad)
    dec_feat = jnp.dot(dec, w_s, preferred_element_type=f32)       # (tb, H_pad)

    # Elementwise chain in f32 (VPU/EUP).
    cov_feat = cov[:, :, None] * w_c
    att = enc_feat + dec_feat[:, None, :] + cov_feat + b_a

    # e_t = v(tanh(att)): VPU multiply + lane reduce, no N=1 MXU matmul.
    e_t = jnp.sum(jnp.tanh(att) * v_w, axis=-1)                    # (tb, S_pad)

    # Mask padded source positions, then a numerically-stable exact softmax.
    col = jax.lax.broadcasted_iota(jnp.int32, (tb, s_pad), 1)
    e_t = jnp.where(col < valid_s, e_t, -1e30)
    e_max = jnp.max(e_t, axis=-1, keepdims=True)
    e_exp = jnp.exp(e_t - e_max)
    a_t = e_exp / jnp.sum(e_exp, axis=-1, keepdims=True)

    attn_ref[...] = a_t                               # lane-dense (S_pad % 128 == 0)
    sumcov_ref[...] = cov + a_t


def _choose_batch_tile(batch, s_pad, h_pad, budget_bytes=24 << 20):
    """Largest batch tile whose working set fits a v7x-safe VMEM budget."""
    # per-batch-row: bf16 enc tile (double-buffered) + ~4 f32 (S_pad, H_pad) temps
    per_row = s_pad * h_pad * (2 * 2 + 4 * 4)
    fit = max(1, budget_bytes // max(per_row, 1))
    if batch <= fit:
        return batch
    best = None
    for tb in range(_SUBLANE, min(batch, fit) + 1, _SUBLANE):
        if batch % tb == 0:            # tile must divide batch and be 8-aligned
            best = tb
    return best if best is not None else batch


@jax.jit
def attention_forward(encoder_output, decoder_hidden, coverage, w_slab, rows):
    """Pallas port of Attention.forward.

    `w_slab` / `rows` come from pack_attention_params (packed once at init).
    Returns (a_t, sum_coverage) in the original (B, S) shapes, f32.
    """
    # TODO(synk): in a real decode loop, hoist enc_feat = encoder_output @ w_h
    # out of the per-step call (it is constant across decoder steps).
    b, s, h = encoder_output.shape
    h_pad = w_slab.shape[1]
    s_pad = _round_up(max(s, _LANE), _LANE)

    # Lane-dense zero padding of activations; parameters are pre-padded at init.
    enc = jnp.pad(encoder_output.astype(jnp.bfloat16),
                  ((0, 0), (0, s_pad - s), (0, h_pad - h)))
    dec = jnp.pad(decoder_hidden.astype(jnp.bfloat16), ((0, 0), (0, h_pad - h)))
    cov = jnp.pad(coverage.astype(jnp.float32), ((0, 0), (0, s_pad - s)))

    tb = _choose_batch_tile(b, s_pad, h_pad)
    grid = (b // tb,)
    kernel = functools.partial(attention_kernel, valid_s=s)

    out_shape = (jax.ShapeDtypeStruct((b, s_pad), jnp.float32),   # a_t
                 jax.ShapeDtypeStruct((b, s_pad), jnp.float32))   # sum_coverage

    a_pad, sum_cov_pad = pl.pallas_call(
        kernel,
        out_shape=out_shape,
        grid_spec=pltpu.PrefetchScalarGridSpec(
            num_scalar_prefetch=0,
            grid=grid,
            in_specs=[
                pl.BlockSpec((tb, s_pad, h_pad), lambda i: (i, 0, 0)),   # enc
                pl.BlockSpec((tb, h_pad), lambda i: (i, 0)),             # dec
                pl.BlockSpec((tb, s_pad), lambda i: (i, 0)),             # coverage
                pl.BlockSpec((2 * h_pad, h_pad), lambda i: (0, 0)),      # bf16 weights
                pl.BlockSpec((3 * _SUBLANE, h_pad), lambda i: (0, 0)),   # f32 rows
            ],
            out_specs=(
                pl.BlockSpec((tb, s_pad), lambda i: (i, 0)),
                pl.BlockSpec((tb, s_pad), lambda i: (i, 0)),
            ),
        ),
        compiler_params=pltpu.CompilerParams(
            dimension_semantics=("parallel",),
            vmem_limit_bytes=32 << 20),          # safe on v7x's 64 MiB VMEM
        input_output_aliases={2: 1},             # coverage -> sum_coverage buffer
    )(enc, dec, cov, w_slab, rows)

    return a_pad[:, :s], sum_cov_pad[:, :s]


if __name__ == "__main__":
    # Module config: hidden_dim = 32; toy batch = 2, source length = 8.
    H, B, S = 32, 2, 8
    key = jax.random.PRNGKey(0)
    ks = jax.random.split(key, 11)

    def w(k, shape, scale=0.1):
        return jax.random.normal(k, shape, jnp.float32) * scale

    wh_w, wh_b = w(ks[0], (H, H)), w(ks[1], (H,))
    ws_w, ws_b = w(ks[2], (H, H)), w(ks[3], (H,))
    wc_w, wc_b = w(ks[4], (H, 1)), w(ks[5], (H,))
    v_w_, v_b_ = w(ks[6], (1, H)), w(ks[7], (1,))

    encoder_output = jax.random.normal(ks[8], (B, S, H), jnp.float32)
    decoder_hidden = jax.random.normal(ks[9], (B, H), jnp.float32)
    coverage = jax.random.uniform(ks[10], (B, S), jnp.float32)

    # Pack parameters ONCE (host side); reused by every forward / decode step.
    H_pad = _round_up(max(H, _LANE), _LANE)
    w_slab, rows = pack_attention_params(wh_w, wh_b, ws_w, ws_b,
                                         wc_w, wc_b, v_w_, v_b_, h_pad=H_pad)

    a_t, sum_cov = jax.block_until_ready(
        attention_forward(encoder_output, decoder_hidden, coverage, w_slab, rows))

    # Pure-JAX f32 reference mirroring the PyTorch forward (including v's bias).
    enc_feat = encoder_output @ wh_w.T + wh_b
    dec_feat = (decoder_hidden @ ws_w.T + ws_b)[:, None, :]
    cov_feat = coverage[:, :, None] @ wc_w.T + wc_b
    e_t_ref = jnp.squeeze(jnp.tanh(enc_feat + dec_feat + cov_feat) @ v_w_.T, -1) + v_b_
    a_ref = jax.nn.softmax(e_t_ref, axis=-1)
    sum_cov_ref = coverage + a_ref

    assert a_t.shape == (B, S) and sum_cov.shape == (B, S)
    assert np.allclose(np.asarray(a_t).sum(-1), 1.0, atol=1e-4)
    assert np.allclose(np.asarray(a_t), np.asarray(a_ref), atol=7e-3, rtol=5e-2)
    assert np.allclose(np.asarray(sum_cov), np.asarray(sum_cov_ref), atol=7e-3, rtol=5e-2)

    print("KERNEL_OK")
</pallas_src>

<mosaic_0001>
module attributes {stable_mosaic.version = 11 : i64} {
  func.func @attention_kernel(%arg0: i32, %arg1: memref<2x128x128xbf16, #tpu.memory_space<vmem>>, %arg2: memref<2x128xbf16, #tpu.memory_space<vmem>>, %arg3: memref<2x128xf32, #tpu.memory_space<vmem>>, %arg4: memref<256x128xbf16, #tpu.memory_space<vmem>>, %arg5: memref<24x128xf32, #tpu.memory_space<vmem>>, %arg6: memref<2x128xf32, #tpu.memory_space<vmem>>, %arg7: memref<2x128xf32, #tpu.memory_space<vmem>>) attributes {dimension_semantics = [#tpu.dimension_semantics<parallel>], iteration_bounds = array<i64: 1>, scalar_prefetch = 0 : i64, scratch_operands = 0 : i64, tpu.core_type = #tpu.core_type<tc>, window_params = [{transform_indices = @transform_0, window_bounds = array<i64: 2, 128, 128>}, {transform_indices = @transform_1, window_bounds = array<i64: 2, 128>}, {transform_indices = @transform_2, window_bounds = array<i64: 2, 128>}, {pipeline_mode = #tpu.pipeline_mode<synchronous>, transform_indices = @transform_3, window_bounds = array<i64: 256, 128>}, {pipeline_mode = #tpu.pipeline_mode<synchronous>, transform_indices = @transform_4, window_bounds = array<i64: 24, 128>}, {transform_indices = @transform_5, window_bounds = array<i64: 2, 128>}, {transform_indices = @transform_6, window_bounds = array<i64: 2, 128>}]} {
    %c0 = arith.constant 0 : index
    %c0_0 = arith.constant 0 : index
    %c0_1 = arith.constant 0 : index
    %0 = vector.load %arg1[%c0, %c0_0, %c0_1] : memref<2x128x128xbf16, #tpu.memory_space<vmem>>, vector<2x128x128xbf16>
    %c0_2 = arith.constant 0 : index
    %c0_3 = arith.constant 0 : index
    %1 = vector.load %arg2[%c0_2, %c0_3] : memref<2x128xbf16, #tpu.memory_space<vmem>>, vector<2x128xbf16>
    %c0_4 = arith.constant 0 : index
    %c0_5 = arith.constant 0 : index
    %2 = vector.load %arg3[%c0_4, %c0_5] : memref<2x128xf32, #tpu.memory_space<vmem>>, vector<2x128xf32>
    %c0_6 = arith.constant 0 : index
    %c0_7 = arith.constant 0 : index
    %3 = vector.load %arg4[%c0_6, %c0_7] : memref<256x128xbf16, #tpu.memory_space<vmem>>, vector<128x128xbf16>
    %c128 = arith.constant 128 : index
    %c0_8 = arith.constant 0 : index
    %4 = vector.load %arg4[%c128, %c0_8] : memref<256x128xbf16, #tpu.memory_space<vmem>>, vector<128x128xbf16>
    %c0_9 = arith.constant 0 : index
    %c0_10 = arith.constant 0 : index
    %5 = vector.load %arg5[%c0_9, %c0_10] : memref<24x128xf32, #tpu.memory_space<vmem>>, vector<1x128xf32>
    %6 = vector.shape_cast %5 : vector<1x128xf32> to vector<1x1x128xf32>
    %c8 = arith.constant 8 : index
    %c0_11 = arith.constant 0 : index
    %7 = vector.load %arg5[%c8, %c0_11] : memref<24x128xf32, #tpu.memory_space<vmem>>, vector<1x128xf32>
    %8 = vector.shape_cast %7 : vector<1x128xf32> to vector<1x1x128xf32>
    %c16 = arith.constant 16 : index
    %c0_12 = arith.constant 0 : index
    %9 = vector.load %arg5[%c16, %c0_12] : memref<24x128xf32, #tpu.memory_space<vmem>>, vector<1x128xf32>
    %10 = vector.shape_cast %9 : vector<1x128xf32> to vector<1x1x128xf32>
    %11 = vector.shape_cast %0 : vector<2x128x128xbf16> to vector<256x128xbf16>
    %cst = arith.constant dense<0.000000e+00> : vector<256x128xf32>
    %12 = tpu.matmul %11, %3, %cst {dimension_numbers = #tpu.dot_dimension_numbers<[1], [0], [0], [1], [0, 0, 1, 1], [], []>} : vector<256x128xbf16>, vector<128x128xbf16>, vector<256x128xf32> -> vector<256x128xf32>
    %13 = vector.shape_cast %12 : vector<256x128xf32> to vector<2x128x128xf32>
    %cst_13 = arith.constant dense<0.000000e+00> : vector<2x128xf32>
    %14 = tpu.matmul %1, %4, %cst_13 {dimension_numbers = #tpu.dot_dimension_numbers<[1], [0], [0], [1], [0, 0, 1, 1], [], []>} : vector<2x128xbf16>, vector<128x128xbf16>, vector<2x128xf32> -> vector<2x128xf32>
    %15 = vector.shape_cast %2 : vector<2x128xf32> to vector<2x128x1xf32>
    %16 = vector.broadcast %15 : vector<2x128x1xf32> to vector<2x128x128xf32>
    %17 = vector.broadcast %6 : vector<1x1x128xf32> to vector<2x128x128xf32>
    %18 = arith.mulf %16, %17 : vector<2x128x128xf32>
    %19 = vector.shape_cast %14 : vector<2x128xf32> to vector<2x1x128xf32>
    %20 = vector.broadcast %19 : vector<2x1x128xf32> to vector<2x128x128xf32>
    %21 = arith.addf %13, %20 : vector<2x128x128xf32>
    %22 = arith.addf %21, %18 : vector<2x128x128xf32>
    %23 = vector.broadcast %8 : vector<1x1x128xf32> to vector<2x128x128xf32>
    %24 = arith.addf %22, %23 : vector<2x128x128xf32>
    %25 = math.tanh %24 : vector<2x128x128xf32>
    %26 = vector.broadcast %10 : vector<1x1x128xf32> to vector<2x128x128xf32>
    %27 = arith.mulf %25, %26 : vector<2x128x128xf32>
    %cst_14 = arith.constant dense<0.000000e+00> : vector<2x128xf32>
    %28 = vector.multi_reduction <add>, %27, %cst_14 [2] : vector<2x128x128xf32> to vector<2x128xf32>
    %29 = tpu.iota {dimensions = array<i32: 1>} : vector<2x128xi32>
    %c8_i32 = arith.constant 8 : i32
    %30 = vector.broadcast %c8_i32 : i32 to vector<2x128xi32>
    %31 = arith.cmpi slt, %29, %30 : vector<2x128xi32>
    %cst_15 = arith.constant -1.000000e+30 : f32
    %32 = vector.broadcast %cst_15 : f32 to vector<2x128xf32>
    %33 = arith.select %31, %28, %32 : vector<2x128xi1>, vector<2x128xf32>
    %cst_16 = arith.constant dense<0xFF800000> : vector<2xf32>
    %34 = vector.multi_reduction <maximumf>, %33, %cst_16 [1] : vector<2x128xf32> to vector<2xf32>
    %35 = vector.shape_cast %34 : vector<2xf32> to vector<2x1xf32>
    %36 = vector.broadcast %35 : vector<2x1xf32> to vector<2x128xf32>
    %37 = arith.subf %33, %36 : vector<2x128xf32>
    %38 = math.exp %37 : vector<2x128xf32>
    %cst_17 = arith.constant dense<0.000000e+00> : vector<2xf32>
    %39 = vector.multi_reduction <add>, %38, %cst_17 [1] : vector<2x128xf32> to vector<2xf32>
    %40 = vector.shape_cast %39 : vector<2xf32> to vector<2x1xf32>
    %41 = vector.broadcast %40 : vector<2x1xf32> to vector<2x128xf32>
    %42 = arith.divf %38, %41 : vector<2x128xf32>
    %c0_18 = arith.constant 0 : index
    %c0_19 = arith.constant 0 : index
    %43 = vector.load %arg6[%c0_18, %c0_19] : memref<2x128xf32, #tpu.memory_space<vmem>>, vector<2x128xf32>
    tpu.vector_store %arg6[%c0_18, %c0_19], %42 {strides = array<i32>} : memref<2x128xf32, #tpu.memory_space<vmem>>, vector<2x128xf32>,
    %44 = arith.addf %2, %42 : vector<2x128xf32>
    %c0_20 = arith.constant 0 : index
    %c0_21 = arith.constant 0 : index
    %45 = vector.load %arg7[%c0_20, %c0_21] : memref<2x128xf32, #tpu.memory_space<vmem>>, vector<2x128xf32>
    tpu.vector_store %arg7[%c0_20, %c0_21], %44 {strides = array<i32>} : memref<2x128xf32, #tpu.memory_space<vmem>>, vector<2x128xf32>,
    return
  }
  func.func @transform_0(%arg0: i32) -> (i32, i32, i32) {
    %c0_i32 = arith.constant 0 : i32
    %c0_i32_0 = arith.constant 0 : i32
    %c0_i32_1 = arith.constant 0 : i32
    return %arg0, %c0_i32, %c0_i32_0 : i32, i32, i32
  }
  func.func @transform_1(%arg0: i32) -> (i32, i32) {
    %c0_i32 = arith.constant 0 : i32
    %c0_i32_0 = arith.constant 0 : i32
    return %arg0, %c0_i32 : i32, i32
  }
  func.func @transform_2(%arg0: i32) -> (i32, i32) {
    %c0_i32 = arith.constant 0 : i32
    %c0_i32_0 = arith.constant 0 : i32
    return %arg0, %c0_i32 : i32, i32
  }
  func.func @transform_3(%arg0: i32) -> (i32, i32) {
    %c0_i32 = arith.constant 0 : i32
    %c0_i32_0 = arith.constant 0 : i32
    %c0_i32_1 = arith.constant 0 : i32
    return %c0_i32, %c0_i32_0 : i32, i32
  }
  func.func @transform_4(%arg0: i32) -> (i32, i32) {
    %c0_i32 = arith.constant 0 : i32
    %c0_i32_0 = arith.constant 0 : i32
    %c0_i32_1 = arith.constant 0 : i32
    return %c0_i32, %c0_i32_0 : i32, i32
  }
  func.func @transform_5(%arg0: i32) -> (i32, i32) {
    %c0_i32 = arith.constant 0 : i32
    %c0_i32_0 = arith.constant 0 : i32
    return %arg0, %c0_i32 : i32, i32
  }
  func.func @transform_6(%arg0: i32) -> (i32, i32) {
    %c0_i32 = arith.constant 0 : i32
    %c0_i32_0 = arith.constant 0 : i32
    return %arg0, %c0_i32 : i32, i32
  }
}

</mosaic_0001>

<llo_original>
// kernel: attention_forward.1
$region0: #{attention_forward.1}
  #allocation0 [shape = 'u32[]', space=smem, size = 0x4, offset = 0x4, fixed_abs, tag = 'smem constant byte address 0x4 - core index']
  #allocation1 [shape = 'u32[144,128]{1,0:T(1,128)}', space=vmem, size = 0x12000, scoped, tag = 'internal scratch']
  %s0 = inlined_call_operand.vmem [shape: bf16[2,128,128], index: 0, kind: input, shape index: {}]
  %s1 = inlined_call_operand.vmem [shape: bf16[2,128], index: 1, kind: input, shape index: {}]
  %s2 = inlined_call_operand.vmem [shape: f32[2,128], index: 2, kind: input, shape index: {}, may-alias: {2,6}]
  %s3 = inlined_call_operand.vmem [shape: bf16[256,128], index: 3, kind: input, shape index: {}]
  %s4 = inlined_call_operand.vmem [shape: f32[24,128], index: 4, kind: input, shape index: {}]
  %s5 = inlined_call_operand.hbm [shape: f32[2,128], index: 5, kind: output, shape index: {0}]
  %s6 = inlined_call_operand.vmem [shape: f32[2,128], index: 6, kind: output, shape index: {1}, may-alias: {2,6}]
  %7 = xla_tuple %s5, %s6
  %s8 = sld [smem:[#allocation0]]
  $region38: #{attention_forward.1} parent=0
    _
  %s10 = ssub.s32 1, %s8
  %s11 = scalar_select 0, %s10, %s8
  $region1: #{attention_forward.1} parent=0
    #allocation2 [shape = 'u8[1024]{0}', space=vmem, size = 0x400, scoped, tag = 'output window, operand 0, single buffered']
    #allocation3 [shape = 's32[1]{0}', space=sflag, size = 0x4, scoped, tag = 'scoped memory for attention_forward.1']
    %12 = vsyncpa [#allocation3], 0
    // Predicated region
    $region2: #{attention_forward.1} parent=1 // pred_check
      _
    $region3: #{attention_forward.1} parent=1 // pred_check_branch
      %14 = sbr.rel (0) target = $region5
    $region4: #{attention_forward.1} parent=1 // pred_region
      _
    $region5: #{attention_forward.1} parent=1 // pred_fallthru
      _
    // Predicated region
    $region6: #{attention_forward.1} parent=1 // pred_check
      _
    $region7: #{attention_forward.1} parent=1 // pred_check_branch
      %16 = sbr.rel (0) target = $region9
    $region8: #{attention_forward.1} parent=1 // pred_region
      _
    $region9: #{attention_forward.1} parent=1 // pred_fallthru
      _
    // Predicated region
    $region10: #{attention_forward.1} parent=1 // pred_check
      _
    $region11: #{attention_forward.1} parent=1 // pred_check_branch
      %18 = sbr.rel (0) target = $region13
    $region12: #{attention_forward.1} parent=1 // pred_region
      _
    $region13: #{attention_forward.1} parent=1 // pred_fallthru
      _
    // Predicated region
    $region14: #{attention_forward.1} parent=1 // pred_check
      _
    $region15: #{attention_forward.1} parent=1 // pred_check_branch
      %20 = sbr.rel (0) target = $region17
    $region16: #{attention_forward.1} parent=1 // pred_region
      _
    $region17: #{attention_forward.1} parent=1 // pred_fallthru
      _
    // Predicated region
    $region18: #{attention_forward.1} parent=1 // pred_check
      _
    $region19: #{attention_forward.1} parent=1 // pred_check_branch
      %22 = sbr.rel (0) target = $region21
    $region20: #{attention_forward.1} parent=1 // pred_region
      _
    $region21: #{attention_forward.1} parent=1 // pred_fallthru
      _
    %v24 = vld [vmem:[%s0] sm:$0xf]
    %v25 = vld [vmem:[%s0 + $0x4] sm:$0xf]
    %v26 = vld [vmem:[%s0 + $0x8] sm:$0xf]
    %v27 = vld [vmem:[%s0 + $0xc] sm:$0xf]
    %v28 = vld [vmem:[%s0 + $0x10] sm:$0xf]
    %v29 = vld [vmem:[%s0 + $0x14] sm:$0xf]
    %v30 = vld [vmem:[%s0 + $0x18] sm:$0xf]
    %v31 = vld [vmem:[%s0 + $0x1c] sm:$0xf]
    %v32 = vld [vmem:[%s0 + $0x20] sm:$0xf]
    %v33 = vld [vmem:[%s0 + $0x24] sm:$0xf]
    %v34 = vld [vmem:[%s0 + $0x28] sm:$0xf]
    %v35 = vld [vmem:[%s0 + $0x2c] sm:$0xf]
    %v36 = vld [vmem:[%s0 + $0x30] sm:$0xf]
    %v37 = vld [vmem:[%s0 + $0x34] sm:$0xf]
    %v38 = vld [vmem:[%s0 + $0x38] sm:$0xf]
    %v39 = vld [vmem:[%s0 + $0x3c] sm:$0xf]
    %v40 = vld [vmem:[%s0 + $0x40] sm:$0xf]
    %v41 = vld [vmem:[%s0 + $0x44] sm:$0xf]
    %v42 = vld [vmem:[%s0 + $0x48] sm:$0xf]
    %v43 = vld [vmem:[%s0 + $0x4c] sm:$0xf]
    %v44 = vld [vmem:[%s0 + $0x50] sm:$0xf]
    %v45 = vld [vmem:[%s0 + $0x54] sm:$0xf]
    %v46 = vld [vmem:[%s0 + $0x58] sm:$0xf]
    %v47 = vld [vmem:[%s0 + $0x5c] sm:$0xf]
    %v48 = vld [vmem:[%s0 + $0x60] sm:$0xf]
    %v49 = vld [vmem:[%s0 + $0x64] sm:$0xf]
    %v50 = vld [vmem:[%s0 + $0x68] sm:$0xf]
    %v51 = vld [vmem:[%s0 + $0x6c] sm:$0xf]
    %v52 = vld [vmem:[%s0 + $0x70] sm:$0xf]
    %v53 = vld [vmem:[%s0 + $0x74] sm:$0xf]
    %v54 = vld [vmem:[%s0 + $0x78] sm:$0xf]
    %v55 = vld [vmem:[%s0 + $0x7c] sm:$0xf]
    %v56 = vld [vmem:[%s1] sm:$0x1]
    %v57 = vld [vmem:[%s2] sm:$0x3]
    %v58 = vld [vmem:[%s3] sm:$0xf]
    %v59 = vld [vmem:[%s3 + $0x4] sm:$0xf]
    %v60 = vld [vmem:[%s3 + $0x8] sm:$0xf]
    %v61 = vld [vmem:[%s3 + $0xc] sm:$0xf]
    %v62 = vld [vmem:[%s3 + $0x10] sm:$0xf]
    %v63 = vld [vmem:[%s3 + $0x14] sm:$0xf]
    %v64 = vld [vmem:[%s3 + $0x18] sm:$0xf]
    %v65 = vld [vmem:[%s3 + $0x1c] sm:$0xf]
    %v66 = vld [vmem:[%s3 + $0x20] sm:$0xf]
    %v67 = vld [vmem:[%s3 + $0x24] sm:$0xf]
    %v68 = vld [vmem:[%s3 + $0x28] sm:$0xf]
    %v69 = vld [vmem:[%s3 + $0x2c] sm:$0xf]
    %v70 = vld [vmem:[%s3 + $0x30] sm:$0xf]
    %v71 = vld [vmem:[%s3 + $0x34] sm:$0xf]
    %v72 = vld [vmem:[%s3 + $0x38] sm:$0xf]
    %v73 = vld [vmem:[%s3 + $0x3c] sm:$0xf]
    %v74 = vld [vmem:[%s3 + $0x40] sm:$0xf]
    %v75 = vld [vmem:[%s3 + $0x44] sm:$0xf]
    %v76 = vld [vmem:[%s3 + $0x48] sm:$0xf]
    %v77 = vld [vmem:[%s3 + $0x4c] sm:$0xf]
    %v78 = vld [vmem:[%s3 + $0x50] sm:$0xf]
    %v79 = vld [vmem:[%s3 + $0x54] sm:$0xf]
    %v80 = vld [vmem:[%s3 + $0x58] sm:$0xf]
    %v81 = vld [vmem:[%s3 + $0x5c] sm:$0xf]
    %v82 = vld [vmem:[%s3 + $0x60] sm:$0xf]
    %v83 = vld [vmem:[%s3 + $0x64] sm:$0xf]
    %v84 = vld [vmem:[%s3 + $0x68] sm:$0xf]
    %v85 = vld [vmem:[%s3 + $0x6c] sm:$0xf]
    %v86 = vld [vmem:[%s3 + $0x70] sm:$0xf]
    %v87 = vld [vmem:[%s3 + $0x74] sm:$0xf]
    %v88 = vld [vmem:[%s3 + $0x78] sm:$0xf]
    %v89 = vld [vmem:[%s3 + $0x7c] sm:$0xf]
    %v90 = vld [vmem:[%s4] sm:$0x1]
    %v91 = vld [vmem:[%s4 + $0x8] sm:$0x1]
    %v92 = vld [vmem:[%s4 + $0x10] sm:$0x1]
    %v125 = vunpack.c.l.b16 %v24
    %v126 = vunpack.c.l.b16 %v25
    %v127 = vunpack.c.l.b16 %v26
    %v128 = vunpack.c.l.b16 %v27
    %v129 = vunpack.c.l.b16 %v28
    %v130 = vunpack.c.l.b16 %v29
    %v131 = vunpack.c.l.b16 %v30
    %v132 = vunpack.c.l.b16 %v31
    %v133 = vunpack.c.l.b16 %v32
    %v134 = vunpack.c.l.b16 %v33
    %v135 = vunpack.c.l.b16 %v34
    %v136 = vunpack.c.l.b16 %v35
    %v137 = vunpack.c.l.b16 %v36
    %v138 = vunpack.c.l.b16 %v37
    %v139 = vunpack.c.l.b16 %v38
    %v140 = vunpack.c.l.b16 %v39
    %v141 = vunpack.c.l.b16 %v40
    %v142 = vunpack.c.l.b16 %v41
    %v143 = vunpack.c.l.b16 %v42
    %v144 = vunpack.c.l.b16 %v43
    %v145 = vunpack.c.l.b16 %v44
    %v146 = vunpack.c.l.b16 %v45
    %v147 = vunpack.c.l.b16 %v46
    %v148 = vunpack.c.l.b16 %v47
    %v149 = vunpack.c.l.b16 %v48
    %v150 = vunpack.c.l.b16 %v49
    %v151 = vunpack.c.l.b16 %v50
    %v152 = vunpack.c.l.b16 %v51
    %v153 = vunpack.c.l.b16 %v52
    %v154 = vunpack.c.l.b16 %v53
    %v155 = vunpack.c.l.b16 %v54
    %v156 = vunpack.c.l.b16 %v55
    %v157 = vpack.c.b16 %v126, %v125
    %v158 = vpack.c.b16 %v128, %v127
    %v159 = vpack.c.b16 %v130, %v129
    %v160 = vpack.c.b16 %v132, %v131
    %v161 = vpack.c.b16 %v134, %v133
    %v162 = vpack.c.b16 %v136, %v135
    %v163 = vpack.c.b16 %v138, %v137
    %v164 = vpack.c.b16 %v140, %v139
    %v165 = vpack.c.b16 %v142, %v141
    %v166 = vpack.c.b16 %v144, %v143
    %v167 = vpack.c.b16 %v146, %v145
    %v168 = vpack.c.b16 %v148, %v147
    %v169 = vpack.c.b16 %v150, %v149
    %v170 = vpack.c.b16 %v152, %v151
    %v171 = vpack.c.b16 %v154, %v153
    %v172 = vpack.c.b16 %v156, %v155
    %v205 = vunpack.c.l.b16 %v58
    %v206 = vunpack.c.l.b16 %v59
    %v207 = vunpack.c.l.b16 %v60
    %v208 = vunpack.c.l.b16 %v61
    %v209 = vunpack.c.l.b16 %v62
    %v210 = vunpack.c.l.b16 %v63
    %v211 = vunpack.c.l.b16 %v64
    %v212 = vunpack.c.l.b16 %v65
    %v213 = vunpack.c.l.b16 %v66
    %v214 = vunpack.c.l.b16 %v67
    %v215 = vunpack.c.l.b16 %v68
    %v216 = vunpack.c.l.b16 %v69
    %v217 = vunpack.c.l.b16 %v70
    %v218 = vunpack.c.l.b16 %v71
    %v219 = vunpack.c.l.b16 %v72
    %v220 = vunpack.c.l.b16 %v73
    %v221 = vpack.c.b16 %v206, %v205
    %v222 = vpack.c.b16 %v208, %v207
    %v223 = vpack.c.b16 %v210, %v209
    %v224 = vpack.c.b16 %v212, %v211
    %v225 = vpack.c.b16 %v214, %v213
    %v226 = vpack.c.b16 %v216, %v215
    %v227 = vpack.c.b16 %v218, %v217
    %v228 = vpack.c.b16 %v220, %v219
    %237 = vmatprep.subr.bf16.mxu0 0
    %238 = vmatpush1.bf16.msra.mxu0 %v228
    %239 = vmatprep.subr.bf16.mxu0 0
    %240 = vmatpush1.bf16.msra.mxu0 %v227
    %241 = vmatprep.subr.bf16.mxu0 0
    %242 = vmatpush1.bf16.msra.mxu0 %v226
    %243 = vmatprep.subr.bf16.mxu0 0
    %244 = vmatpush1.bf16.msra.mxu0 %v225
    %245 = vmatprep.subr.bf16.mxu0 0
    %246 = vmatpush1.bf16.msra.mxu0 %v224
    %247 = vmatprep.subr.bf16.mxu0 0
    %248 = vmatpush1.bf16.msra.mxu0 %v223
    %249 = vmatprep.subr.bf16.mxu0 0
    %250 = vmatpush1.bf16.msra.mxu0 %v222
    %251 = vmatprep.subr.bf16.mxu0 0
    %252 = vmatpush1.bf16.msra.mxu0 %v221
    %253 = vmatprep.subr.bf16.mxu0 0
    %254 = vmatpush2.bf16.msra.mxu0 0
    %255 = vmatprep.subr.bf16.mxu0 0
    %256 = vmatpush2.bf16.msra.mxu0 0
    %257 = vmatprep.subr.bf16.mxu0 0
    %258 = vmatpush2.bf16.msra.mxu0 0
    %259 = vmatprep.subr.bf16.mxu0 0
    %260 = vmatpush2.bf16.msra.mxu0 0
    %261 = vmatprep.subr.bf16.mxu0 0
    %262 = vmatpush2.bf16.msra.mxu0 0
    %263 = vmatprep.subr.bf16.mxu0 0
    %264 = vmatpush2.bf16.msra.mxu0 0
    %265 = vmatprep.subr.bf16.mxu0 0
    %266 = vmatpush2.bf16.msra.mxu0 0
    %267 = vmatprep.subr.bf16.mxu0 0
    %268 = vmatpush2.bf16.msra.mxu0 0
    %269 = vmatprep.mubr.bf16.mxu0 0
    %270 = vmatmul.mubr.bf16.gmra.mxu0 %v157
    %v271 = vpop.f32.mrf.mxu0
    %v272 = vadd.f32 0.0, %v271
    %v273 = vpop.f32.mrf.mxu0
    %v274 = vpop.f32.mrf.mxu0
    %v275 = vadd.f32 0.0, %v274
    %v276 = vpop.f32.mrf.mxu0
    %277 = vmatprep.mubr.bf16.mxu0 0
    %278 = vmatmul.mubr.bf16.gmra.mxu0 %v158
    %v279 = vpop.f32.mrf.mxu0
    %v280 = vadd.f32 0.0, %v279
    %v281 = vpop.f32.mrf.mxu0
    %v282 = vpop.f32.mrf.mxu0
    %v283 = vadd.f32 0.0, %v282
    %v284 = vpop.f32.mrf.mxu0
    %285 = vmatprep.mubr.bf16.mxu0 0
    %286 = vmatmul.mubr.bf16.gmra.mxu0 %v159
    %v287 = vpop.f32.mrf.mxu0
    %v288 = vadd.f32 0.0, %v287
    %v289 = vpop.f32.mrf.mxu0
    %v290 = vpop.f32.mrf.mxu0
    %v291 = vadd.f32 0.0, %v290
    %v292 = vpop.f32.mrf.mxu0
    %293 = vmatprep.mubr.bf16.mxu0 0
    %294 = vmatmul.mubr.bf16.gmra.mxu0 %v160
    %v295 = vpop.f32.mrf.mxu0
    %v296 = vadd.f32 0.0, %v295
    %v297 = vpop.f32.mrf.mxu0
    %v298 = vpop.f32.mrf.mxu0
    %v299 = vadd.f32 0.0, %v298
    %v300 = vpop.f32.mrf.mxu0
    %301 = vmatprep.mubr.bf16.mxu0 0
    %302 = vmatmul.mubr.bf16.gmra.mxu0 %v161
    %v303 = vpop.f32.mrf.mxu0
    %v304 = vadd.f32 0.0, %v303
    %v305 = vpop.f32.mrf.mxu0
    %v306 = vpop.f32.mrf.mxu0
    %v307 = vadd.f32 0.0, %v306
    %v308 = vpop.f32.mrf.mxu0
    %309 = vmatprep.mubr.bf16.mxu0 0
    %310 = vmatmul.mubr.bf16.gmra.mxu0 %v162
    %v311 = vpop.f32.mrf.mxu0
    %v312 = vadd.f32 0.0, %v311
    %v313 = vpop.f32.mrf.mxu0
    %v314 = vpop.f32.mrf.mxu0
    %v315 = vadd.f32 0.0, %v314
    %v316 = vpop.f32.mrf.mxu0
    %317 = vmatprep.mubr.bf16.mxu0 0
    %318 = vmatmul.mubr.bf16.gmra.mxu0 %v163
    %v319 = vpop.f32.mrf.mxu0
    %v320 = vadd.f32 0.0, %v319
    %v321 = vpop.f32.mrf.mxu0
    %v322 = vpop.f32.mrf.mxu0
    %v323 = vadd.f32 0.0, %v322
    %v324 = vpop.f32.mrf.mxu0
    %325 = vmatprep.mubr.bf16.mxu0 0
    %326 = vmatmul.mubr.bf16.gmra.mxu0 %v164
    %v327 = vpop.f32.mrf.mxu0
    %v328 = vadd.f32 0.0, %v327
    %v329 = vpop.f32.mrf.mxu0
    %v330 = vpop.f32.mrf.mxu0
    %v331 = vadd.f32 0.0, %v330
    %v332 = vpop.f32.mrf.mxu0
    %333 = vmatprep.mubr.bf16.mxu0 0
    %334 = vmatmul.mubr.bf16.gmra.mxu0 %v165
    %v335 = vpop.f32.mrf.mxu0
    %v336 = vadd.f32 0.0, %v335
    %v337 = vpop.f32.mrf.mxu0
    %v338 = vpop.f32.mrf.mxu0
    %v339 = vadd.f32 0.0, %v338
    %v340 = vpop.f32.mrf.mxu0
    %341 = vmatprep.mubr.bf16.mxu0 0
    %342 = vmatmul.mubr.bf16.gmra.mxu0 %v166
    %v343 = vpop.f32.mrf.mxu0
    %v344 = vadd.f32 0.0, %v343
    %v345 = vpop.f32.mrf.mxu0
    %v346 = vpop.f32.mrf.mxu0
    %v347 = vadd.f32 0.0, %v346
    %v348 = vpop.f32.mrf.mxu0
    %349 = vmatprep.mubr.bf16.mxu0 0
    %350 = vmatmul.mubr.bf16.gmra.mxu0 %v167
    %v351 = vpop.f32.mrf.mxu0
    %v352 = vadd.f32 0.0, %v351
    %v353 = vpop.f32.mrf.mxu0
    %v354 = vpop.f32.mrf.mxu0
    %v355 = vadd.f32 0.0, %v354
    %v356 = vpop.f32.mrf.mxu0
    %357 = vmatprep.mubr.bf16.mxu0 0
    %358 = vmatmul.mubr.bf16.gmra.mxu0 %v168
    %v359 = vpop.f32.mrf.mxu0
    %v360 = vadd.f32 0.0, %v359
    %v361 = vpop.f32.mrf.mxu0
    %v362 = vpop.f32.mrf.mxu0
    %v363 = vadd.f32 0.0, %v362
    %v364 = vpop.f32.mrf.mxu0
    %365 = vmatprep.mubr.bf16.mxu0 0
    %366 = vmatmul.mubr.bf16.gmra.mxu0 %v169
    %v367 = vpop.f32.mrf.mxu0
    %v368 = vadd.f32 0.0, %v367
    %v369 = vpop.f32.mrf.mxu0
    %v370 = vpop.f32.mrf.mxu0
    %v371 = vadd.f32 0.0, %v370
    %v372 = vpop.f32.mrf.mxu0
    %373 = vmatprep.mubr.bf16.mxu0 0
    %374 = vmatmul.mubr.bf16.gmra.mxu0 %v170
    %v375 = vpop.f32.mrf.mxu0
    %v376 = vadd.f32 0.0, %v375
    %v377 = vpop.f32.mrf.mxu0
    %v378 = vpop.f32.mrf.mxu0
    %v379 = vadd.f32 0.0, %v378
    %v380 = vpop.f32.mrf.mxu0
    %381 = vmatprep.mubr.bf16.mxu0 0
    %382 = vmatmul.mubr.bf16.gmra.mxu0 %v171
    %v383 = vpop.f32.mrf.mxu0
    %v384 = vadd.f32 0.0, %v383
    %v385 = vpop.f32.mrf.mxu0
    %v386 = vpop.f32.mrf.mxu0
    %v387 = vadd.f32 0.0, %v386
    %v388 = vpop.f32.mrf.mxu0
    %389 = vmatprep.mubr.bf16.mxu0 0
    %390 = vmatmul.mubr.bf16.gmra.mxu0 %v172
    %v391 = vpop.f32.mrf.mxu0
    %v392 = vadd.f32 0.0, %v391
    %v393 = vpop.f32.mrf.mxu0
    %v394 = vpop.f32.mrf.mxu0
    %v395 = vadd.f32 0.0, %v394
    %v396 = vpop.f32.mrf.mxu0
    %397 = vdwg.mxu0
    %v414 = vunpack.c.l.b16 %v74
    %v415 = vunpack.c.l.b16 %v75
    %v416 = vunpack.c.l.b16 %v76
    %v417 = vunpack.c.l.b16 %v77
    %v418 = vunpack.c.l.b16 %v78
    %v419 = vunpack.c.l.b16 %v79
    %v420 = vunpack.c.l.b16 %v80
    %v421 = vunpack.c.l.b16 %v81
    %v422 = vunpack.c.l.b16 %v82
    %v423 = vunpack.c.l.b16 %v83
    %v424 = vunpack.c.l.b16 %v84
    %v425 = vunpack.c.l.b16 %v85
    %v426 = vunpack.c.l.b16 %v86
    %v427 = vunpack.c.l.b16 %v87
    %v428 = vunpack.c.l.b16 %v88
    %v429 = vunpack.c.l.b16 %v89
    %v430 = vpack.c.b16 %v415, %v414
    %v431 = vpack.c.b16 %v417, %v416
    %v432 = vpack.c.b16 %v419, %v418
    %v433 = vpack.c.b16 %v421, %v420
    %v434 = vpack.c.b16 %v423, %v422
    %v435 = vpack.c.b16 %v425, %v424
    %v436 = vpack.c.b16 %v427, %v426
    %v437 = vpack.c.b16 %v429, %v428
    %446 = vmatprep.subr.bf16.mxu0 0
    %447 = vmatpush1.bf16.msra.mxu0 %v437
    %448 = vmatprep.subr.bf16.mxu0 0
    %449 = vmatpush1.bf16.msra.mxu0 %v436
    %450 = vmatprep.subr.bf16.mxu0 0
    %451 = vmatpush1.bf16.msra.mxu0 %v435
    %452 = vmatprep.subr.bf16.mxu0 0
    %453 = vmatpush1.bf16.msra.mxu0 %v434
    %454 = vmatprep.subr.bf16.mxu0 0
    %455 = vmatpush1.bf16.msra.mxu0 %v433
    %456 = vmatprep.subr.bf16.mxu0 0
    %457 = vmatpush1.bf16.msra.mxu0 %v432
    %458 = vmatprep.subr.bf16.mxu0 0
    %459 = vmatpush1.bf16.msra.mxu0 %v431
    %460 = vmatprep.subr.bf16.mxu0 0
    %461 = vmatpush1.bf16.msra.mxu0 %v430
    %462 = vmatprep.subr.bf16.mxu0 0
    %463 = vmatpush2.bf16.msra.mxu0 0
    %464 = vmatprep.subr.bf16.mxu0 0
    %465 = vmatpush2.bf16.msra.mxu0 0
    %466 = vmatprep.subr.bf16.mxu0 0
    %467 = vmatpush2.bf16.msra.mxu0 0
    %468 = vmatprep.subr.bf16.mxu0 0
    %469 = vmatpush2.bf16.msra.mxu0 0
    %470 = vmatprep.subr.bf16.mxu0 0
    %471 = vmatpush2.bf16.msra.mxu0 0
    %472 = vmatprep.subr.bf16.mxu0 0
    %473 = vmatpush2.bf16.msra.mxu0 0
    %474 = vmatprep.subr.bf16.mxu0 0
    %475 = vmatpush2.bf16.msra.mxu0 0
    %476 = vmatprep.subr.bf16.mxu0 0
    %477 = vmatpush2.bf16.msra.mxu0 0
    %478 = vmatprep.mubr.bf16.mxu0 0
    %479 = vmatmul.mubr.bf16.gmra.mxu0 %v56
    %v480 = vpop.f32.mrf.mxu0
    %v481 = vadd.f32 0.0, %v480
    %v482 = vpop.f32.mrf.mxu0
    %v483 = vpop.f32.mrf.mxu0
    %v484 = vpop.f32.mrf.mxu0
    %485 = vdwg.mxu0
    %v486 = vlaneseq
    %v487 = vshrl.u32 %v486, 7
    %v488 = vsub.s32 0, %v487
    %v489 = vrot.slane %v57, %v488
    %491 = vbcast.lane.b32.xlu0 %v489, 256
    %v492 = vpop.permute.xlu0 %491
    %s494 = sor.u32 256, 8
    %495 = vbcast.lane.b32.xlu0 %v489, %s494
    %v496 = vpop.permute.xlu0 %495
    %s498 = sor.u32 256, 16
    %499 = vbcast.lane.b32.xlu0 %v489, %s498
    %v500 = vpop.permute.xlu0 %499
    %s502 = sor.u32 256, 24
    %503 = vbcast.lane.b32.xlu0 %v489, %s502
    %v504 = vpop.permute.xlu0 %503
    %s506 = sor.u32 256, 32
    %507 = vbcast.lane.b32.xlu0 %v489, %s506
    %v508 = vpop.permute.xlu0 %507
    %s510 = sor.u32 256, 40
    %511 = vbcast.lane.b32.xlu0 %v489, %s510
    %v512 = vpop.permute.xlu0 %511
    %s514 = sor.u32 256, 48
    %515 = vbcast.lane.b32.xlu0 %v489, %s514
    %v516 = vpop.permute.xlu0 %515
    %s518 = sor.u32 256, 56
    %519 = vbcast.lane.b32.xlu0 %v489, %s518
    %v520 = vpop.permute.xlu0 %519
    %s522 = sor.u32 256, 64
    %523 = vbcast.lane.b32.xlu0 %v489, %s522
    %v524 = vpop.permute.xlu0 %523
    %s526 = sor.u32 256, 72
    %527 = vbcast.lane.b32.xlu0 %v489, %s526
    %v528 = vpop.permute.xlu0 %527
    %s530 = sor.u32 256, 80
    %531 = vbcast.lane.b32.xlu0 %v489, %s530
    %v532 = vpop.permute.xlu0 %531
    %s534 = sor.u32 256, 88
    %535 = vbcast.lane.b32.xlu0 %v489, %s534
    %v536 = vpop.permute.xlu0 %535
    %s538 = sor.u32 256, 96
    %539 = vbcast.lane.b32.xlu0 %v489, %s538
    %v540 = vpop.permute.xlu0 %539
    %s542 = sor.u32 256, 104
    %543 = vbcast.lane.b32.xlu0 %v489, %s542
    %v544 = vpop.permute.xlu0 %543
    %s546 = sor.u32 256, 112
    %547 = vbcast.lane.b32.xlu0 %v489, %s546
    %v548 = vpop.permute.xlu0 %547
    %s550 = sor.u32 256, 120
    %551 = vbcast.lane.b32.xlu0 %v489, %s550
    %v552 = vpop.permute.xlu0 %551
    %v553 = vlaneseq
    %v554 = vshrl.u32 %v553, 7
    %v555 = vsub.s32 1, %v554
    %v556 = vrot.slane %v57, %v555
    %558 = vbcast.lane.b32.xlu0 %v556, 256
    %v559 = vpop.permute.xlu0 %558
    %s561 = sor.u32 256, 8
    %562 = vbcast.lane.b32.xlu0 %v556, %s561
    %v563 = vpop.permute.xlu0 %562
    %s565 = sor.u32 256, 16
    %566 = vbcast.lane.b32.xlu0 %v556, %s565
    %v567 = vpop.permute.xlu0 %566
    %s569 = sor.u32 256, 24
    %570 = vbcast.lane.b32.xlu0 %v556, %s569
    %v571 = vpop.permute.xlu0 %570
    %s573 = sor.u32 256, 32
    %574 = vbcast.lane.b32.xlu0 %v556, %s573
    %v575 = vpop.permute.xlu0 %574
    %s577 = sor.u32 256, 40
    %578 = vbcast.lane.b32.xlu0 %v556, %s577
    %v579 = vpop.permute.xlu0 %578
    %s581 = sor.u32 256, 48
    %582 = vbcast.lane.b32.xlu0 %v556, %s581
    %v583 = vpop.permute.xlu0 %582
    %s585 = sor.u32 256, 56
    %586 = vbcast.lane.b32.xlu0 %v556, %s585
    %v587 = vpop.permute.xlu0 %586
    %s589 = sor.u32 256, 64
    %590 = vbcast.lane.b32.xlu0 %v556, %s589
    %v591 = vpop.permute.xlu0 %590
    %s593 = sor.u32 256, 72
    %594 = vbcast.lane.b32.xlu0 %v556, %s593
    %v595 = vpop.permute.xlu0 %594
    %s597 = sor.u32 256, 80
    %598 = vbcast.lane.b32.xlu0 %v556, %s597
    %v599 = vpop.permute.xlu0 %598
    %s601 = sor.u32 256, 88
    %602 = vbcast.lane.b32.xlu0 %v556, %s601
    %v603 = vpop.permute.xlu0 %602
    %s605 = sor.u32 256, 96
    %606 = vbcast.lane.b32.xlu0 %v556, %s605
    %v607 = vpop.permute.xlu0 %606
    %s609 = sor.u32 256, 104
    %610 = vbcast.lane.b32.xlu0 %v556, %s609
    %v611 = vpop.permute.xlu0 %610
    %s613 = sor.u32 256, 112
    %614 = vbcast.lane.b32.xlu0 %v556, %s613
    %v615 = vpop.permute.xlu0 %614
    %s617 = sor.u32 256, 120
    %618 = vbcast.lane.b32.xlu0 %v556, %s617
    %v619 = vpop.permute.xlu0 %618
    %v620 = vlaneseq
    %v621 = vshrl.u32 %v620, 7
    %v622 = vsub.s32 0, %v621
    %v623 = vrot.slane %v90, %v622
    %v624 = vmul.f32 %v492, %v623
    %v625 = vmul.f32 %v496, %v623
    %v626 = vmul.f32 %v500, %v623
    %v627 = vmul.f32 %v504, %v623
    %v628 = vmul.f32 %v508, %v623
    %v629 = vmul.f32 %v512, %v623
    %v630 = vmul.f32 %v516, %v623
    %v631 = vmul.f32 %v520, %v623
    %v632 = vmul.f32 %v524, %v623
    %v633 = vmul.f32 %v528, %v623
    %v634 = vmul.f32 %v532, %v623
    %v635 = vmul.f32 %v536, %v623
    %v636 = vmul.f32 %v540, %v623
    %v637 = vmul.f32 %v544, %v623
    %v638 = vmul.f32 %v548, %v623
    %v639 = vmul.f32 %v552, %v623
    %v640 = vmul.f32 %v559, %v623
    %v641 = vmul.f32 %v563, %v623
    %v642 = vmul.f32 %v567, %v623
    %v643 = vmul.f32 %v571, %v623
    %v644 = vmul.f32 %v575, %v623
    %v645 = vmul.f32 %v579, %v623
    %v646 = vmul.f32 %v583, %v623
    %v647 = vmul.f32 %v587, %v623
    %v648 = vmul.f32 %v591, %v623
    %v649 = vmul.f32 %v595, %v623
    %v650 = vmul.f32 %v599, %v623
    %v651 = vmul.f32 %v603, %v623
    %v652 = vmul.f32 %v607, %v623
    %v653 = vmul.f32 %v611, %v623
    %v654 = vmul.f32 %v615, %v623
    %v655 = vmul.f32 %v619, %v623
    %v658 = vunpack.c.l.s4 1966171168
    %v659 = vunpack.c.0.s8 %v658
    %v660 = vlaneseq
    %v661 = vshrl.u32 %v660, 7
    %v662 = vsub.s32 %v659, %v661
    %v663 = vrot.slane %v481, %v662
    %v664 = vcombine.high %v663, %v663
    %v666 = vunpack.c.l.s4 1966171168
    %v667 = vunpack.c.0.s8 %v666
    %v668 = vlaneseq
    %v669 = vshrl.u32 %v668, 7
    %v670 = vsub.s32 %v667, %v669
    %v671 = vrot.slane %v663, %v670
    %v673 = vunpack.c.l.s4 1966171168
    %v674 = vunpack.c.0.s8 %v673
    %v675 = vlaneseq
    %v676 = vshrl.u32 %v675, 7
    %v677 = vsub.s32 %v674, %v676
    %v678 = vrot.slane %v664, %v677
    %v679 = vlaneseq
    %v680 = vshrl.u32 %v679, 7
    %v681 = vsub.s32 0, %v680
    %v682 = vrot.slane %v671, %v681
    %v683 = vlaneseq
    %v684 = vshrl.u32 %v683, 7
    %v685 = vsub.s32 0, %v684
    %v686 = vrot.slane %v678, %v685
    %v689 = vadd.f32 %v272, %v682
    %v690 = vadd.f32 %v275, %v682
    %v691 = vadd.f32 %v280, %v682
    %v692 = vadd.f32 %v283, %v682
    %v693 = vadd.f32 %v288, %v682
    %v694 = vadd.f32 %v291, %v682
    %v695 = vadd.f32 %v296, %v682
    %v696 = vadd.f32 %v299, %v682
    %v697 = vadd.f32 %v304, %v682
    %v698 = vadd.f32 %v307, %v682
    %v699 = vadd.f32 %v312, %v682
    %v700 = vadd.f32 %v315, %v682
    %v701 = vadd.f32 %v320, %v682
    %v702 = vadd.f32 %v323, %v682
    %v703 = vadd.f32 %v328, %v682
    %v704 = vadd.f32 %v331, %v682
    %v705 = vadd.f32 %v336, %v686
    %v706 = vadd.f32 %v339, %v686
    %v707 = vadd.f32 %v344, %v686
    %v708 = vadd.f32 %v347, %v686
    %v709 = vadd.f32 %v352, %v686
    %v710 = vadd.f32 %v355, %v686
    %v711 = vadd.f32 %v360, %v686
    %v712 = vadd.f32 %v363, %v686
    %v713 = vadd.f32 %v368, %v686
    %v714 = vadd.f32 %v371, %v686
    %v715 = vadd.f32 %v376, %v686
    %v716 = vadd.f32 %v379, %v686
    %v717 = vadd.f32 %v384, %v686
    %v718 = vadd.f32 %v387, %v686
    %v719 = vadd.f32 %v392, %v686
    %v720 = vadd.f32 %v395, %v686
    %v721 = vadd.f32 %v689, %v624
    %v722 = vadd.f32 %v690, %v625
    %v723 = vadd.f32 %v691, %v626
    %v724 = vadd.f32 %v692, %v627
    %v725 = vadd.f32 %v693, %v628
    %v726 = vadd.f32 %v694, %v629
    %v727 = vadd.f32 %v695, %v630
    %v728 = vadd.f32 %v696, %v631
    %v729 = vadd.f32 %v697, %v632
    %v730 = vadd.f32 %v698, %v633
    %v731 = vadd.f32 %v699, %v634
    %v732 = vadd.f32 %v700, %v635
    %v733 = vadd.f32 %v701, %v636
    %v734 = vadd.f32 %v702, %v637
    %v735 = vadd.f32 %v703, %v638
    %v736 = vadd.f32 %v704, %v639
    %v737 = vadd.f32 %v705, %v640
    %v738 = vadd.f32 %v706, %v641
    %v739 = vadd.f32 %v707, %v642
    %v740 = vadd.f32 %v708, %v643
    %v741 = vadd.f32 %v709, %v644
    %v742 = vadd.f32 %v710, %v645
    %v743 = vadd.f32 %v711, %v646
    %v744 = vadd.f32 %v712, %v647
    %v745 = vadd.f32 %v713, %v648
    %v746 = vadd.f32 %v714, %v649
    %v747 = vadd.f32 %v715, %v650
    %v748 = vadd.f32 %v716, %v651
    %v749 = vadd.f32 %v717, %v652
    %v750 = vadd.f32 %v718, %v653
    %v751 = vadd.f32 %v719, %v654
    %v752 = vadd.f32 %v720, %v655
    %v753 = vlaneseq
    %v754 = vshrl.u32 %v753, 7
    %v755 = vsub.s32 0, %v754
    %v756 = vrot.slane %v91, %v755
    %v757 = vadd.f32 %v721, %v756
    %v758 = vadd.f32 %v722, %v756
    %v759 = vadd.f32 %v723, %v756
    %v760 = vadd.f32 %v724, %v756
    %v761 = vadd.f32 %v725, %v756
    %v762 = vadd.f32 %v726, %v756
    %v763 = vadd.f32 %v727, %v756
    %v764 = vadd.f32 %v728, %v756
    %v765 = vadd.f32 %v729, %v756
    %v766 = vadd.f32 %v730, %v756
    %v767 = vadd.f32 %v731, %v756
    %v768 = vadd.f32 %v732, %v756
    %v769 = vadd.f32 %v733, %v756
    %v770 = vadd.f32 %v734, %v756
    %v771 = vadd.f32 %v735, %v756
    %v772 = vadd.f32 %v736, %v756
    %v773 = vadd.f32 %v737, %v756
    %v774 = vadd.f32 %v738, %v756
    %v775 = vadd.f32 %v739, %v756
    %v776 = vadd.f32 %v740, %v756
    %v777 = vadd.f32 %v741, %v756
    %v778 = vadd.f32 %v742, %v756
    %v779 = vadd.f32 %v743, %v756
    %v780 = vadd.f32 %v744, %v756
    %v781 = vadd.f32 %v745, %v756
    %v782 = vadd.f32 %v746, %v756
    %v783 = vadd.f32 %v747, %v756
    %v784 = vadd.f32 %v748, %v756
    %v785 = vadd.f32 %v749, %v756
    %v786 = vadd.f32 %v750, %v756
    %v787 = vadd.f32 %v751, %v756
    %v788 = vadd.f32 %v752, %v756
    %v789 = vtanh.pop %v757
    %v790 = vtanh.pop %v758
    %v791 = vtanh.pop %v759
    %v792 = vtanh.pop %v760
    %v793 = vtanh.pop %v761
    %v794 = vtanh.pop %v762
    %v795 = vtanh.pop %v763
    %v796 = vtanh.pop %v764
    %v797 = vtanh.pop %v765
    %v798 = vtanh.pop %v766
    %v799 = vtanh.pop %v767
    %v800 = vtanh.pop %v768
    %v801 = vtanh.pop %v769
    %v802 = vtanh.pop %v770
    %v803 = vtanh.pop %v771
    %v804 = vtanh.pop %v772
    %v805 = vtanh.pop %v773
    %v806 = vtanh.pop %v774
    %v807 = vtanh.pop %v775
    %v808 = vtanh.pop %v776
    %v809 = vtanh.pop %v777
    %v810 = vtanh.pop %v778
    %v811 = vtanh.pop %v779
    %v812 = vtanh.pop %v780
    %v813 = vtanh.pop %v781
    %v814 = vtanh.pop %v782
    %v815 = vtanh.pop %v783
    %v816 = vtanh.pop %v784
    %v817 = vtanh.pop %v785
    %v818 = vtanh.pop %v786
    %v819 = vtanh.pop %v787
    %v820 = vtanh.pop %v788
    %v821 = vlaneseq
    %v822 = vshrl.u32 %v821, 7
    %v823 = vsub.s32 0, %v822
    %v824 = vrot.slane %v92, %v823
    %v825 = vmul.f32 %v789, %v824
    %v826 = vmul.f32 %v790, %v824
    %v827 = vmul.f32 %v791, %v824
    %v828 = vmul.f32 %v792, %v824
    %v829 = vmul.f32 %v793, %v824
    %v830 = vmul.f32 %v794, %v824
    %v831 = vmul.f32 %v795, %v824
    %v832 = vmul.f32 %v796, %v824
    %v833 = vmul.f32 %v797, %v824
    %v834 = vmul.f32 %v798, %v824
    %v835 = vmul.f32 %v799, %v824
    %v836 = vmul.f32 %v800, %v824
    %v837 = vmul.f32 %v801, %v824
    %v838 = vmul.f32 %v802, %v824
    %v839 = vmul.f32 %v803, %v824
    %v840 = vmul.f32 %v804, %v824
    %v841 = vmul.f32 %v805, %v824
    %v842 = vmul.f32 %v806, %v824
    %v843 = vmul.f32 %v807, %v824
    %v844 = vmul.f32 %v808, %v824
    %v845 = vmul.f32 %v809, %v824
    %v846 = vmul.f32 %v810, %v824
    %v847 = vmul.f32 %v811, %v824
    %v848 = vmul.f32 %v812, %v824
    %v849 = vmul.f32 %v813, %v824
    %v850 = vmul.f32 %v814, %v824
    %v851 = vmul.f32 %v815, %v824
    %v852 = vmul.f32 %v816, %v824
    %v853 = vmul.f32 %v817, %v824
    %v854 = vmul.f32 %v818, %v824
    %v855 = vmul.f32 %v819, %v824
    %v856 = vmul.f32 %v820, %v824
    %857 = vadd.xlane.f32.xlu0 %v825
    %v858 = vpop.xlane.xlu0 %857
    %859 = vadd.xlane.f32.xlu0 %v826
    %v860 = vpop.xlane.xlu0 %859
    %861 = vadd.xlane.f32.xlu0 %v827
    %v862 = vpop.xlane.xlu0 %861
    %863 = vadd.xlane.f32.xlu0 %v828
    %v864 = vpop.xlane.xlu0 %863
    %865 = vadd.xlane.f32.xlu0 %v829
    %v866 = vpop.xlane.xlu0 %865
    %867 = vadd.xlane.f32.xlu0 %v830
    %v868 = vpop.xlane.xlu0 %867
    %869 = vadd.xlane.f32.xlu0 %v831
    %v870 = vpop.xlane.xlu0 %869
    %871 = vadd.xlane.f32.xlu0 %v832
    %v872 = vpop.xlane.xlu0 %871
    %873 = vadd.xlane.f32.xlu0 %v833
    %v874 = vpop.xlane.xlu0 %873
    %875 = vadd.xlane.f32.xlu0 %v834
    %v876 = vpop.xlane.xlu0 %875
    %877 = vadd.xlane.f32.xlu0 %v835
    %v878 = vpop.xlane.xlu0 %877
    %879 = vadd.xlane.f32.xlu0 %v836
    %v880 = vpop.xlane.xlu0 %879
    %881 = vadd.xlane.f32.xlu0 %v837
    %v882 = vpop.xlane.xlu0 %881
    %883 = vadd.xlane.f32.xlu0 %v838
    %v884 = vpop.xlane.xlu0 %883
    %885 = vadd.xlane.f32.xlu0 %v839
    %v886 = vpop.xlane.xlu0 %885
    %887 = vadd.xlane.f32.xlu0 %v840
    %v888 = vpop.xlane.xlu0 %887
    %889 = vadd.xlane.f32.xlu0 %v841
    %v890 = vpop.xlane.xlu0 %889
    %891 = vadd.xlane.f32.xlu0 %v842
    %v892 = vpop.xlane.xlu0 %891
    %893 = vadd.xlane.f32.xlu0 %v843
    %v894 = vpop.xlane.xlu0 %893
    %895 = vadd.xlane.f32.xlu0 %v844
    %v896 = vpop.xlane.xlu0 %895
    %897 = vadd.xlane.f32.xlu0 %v845
    %v898 = vpop.xlane.xlu0 %897
    %899 = vadd.xlane.f32.xlu0 %v846
    %v900 = vpop.xlane.xlu0 %899
    %901 = vadd.xlane.f32.xlu0 %v847
    %v902 = vpop.xlane.xlu0 %901
    %903 = vadd.xlane.f32.xlu0 %v848
    %v904 = vpop.xlane.xlu0 %903
    %905 = vadd.xlane.f32.xlu0 %v849
    %v906 = vpop.xlane.xlu0 %905
    %907 = vadd.xlane.f32.xlu0 %v850
    %v908 = vpop.xlane.xlu0 %907
    %909 = vadd.xlane.f32.xlu0 %v851
    %v910 = vpop.xlane.xlu0 %909
    %911 = vadd.xlane.f32.xlu0 %v852
    %v912 = vpop.xlane.xlu0 %911
    %913 = vadd.xlane.f32.xlu0 %v853
    %v914 = vpop.xlane.xlu0 %913
    %915 = vadd.xlane.f32.xlu0 %v854
    %v916 = vpop.xlane.xlu0 %915
    %917 = vadd.xlane.f32.xlu0 %v855
    %v918 = vpop.xlane.xlu0 %917
    %919 = vadd.xlane.f32.xlu0 %v856
    %v920 = vpop.xlane.xlu0 %919
    %v921 = vlaneseq
    %v922 = vand.u32 %v921, 127
    %vm923 = vcmp.lt.s32.totalorder %v922, 8
    %v956 = vlaneseq
    %v957 = vshrl.u32 %v956, 7
    %v958 = vsub.s32 %v922, %v957
    %v959 = vrot.slane %v858, %v958
    %v960 = vadd.s32 %v922, 4294967288
    %v961 = vlaneseq
    %v962 = vshrl.u32 %v961, 7
    %v963 = vsub.s32 %v960, %v962
    %v964 = vrot.slane %v860, %v963
    %vm965 = vcmask 130112
    %v966 = vsel %vm965, %v964, %v959
    %v967 = vadd.s32 %v922, 4294967280
    %v968 = vlaneseq
    %v969 = vshrl.u32 %v968, 7
    %v970 = vsub.s32 %v967, %v969
    %v971 = vrot.slane %v862, %v970
    %vm972 = vcmask 195712
    %v973 = vsel %vm972, %v971, %v966
    %v974 = vadd.s32 %v922, 4294967272
    %v975 = vlaneseq
    %v976 = vshrl.u32 %v975, 7
    %v977 = vsub.s32 %v974, %v976
    %v978 = vrot.slane %v864, %v977
    %vm979 = vcmask 261312
    %v980 = vsel %vm979, %v978, %v973
    %v981 = vadd.s32 %v922, 4294967264
    %v982 = vlaneseq
    %v983 = vshrl.u32 %v982, 7
    %v984 = vsub.s32 %v981, %v983
    %v985 = vrot.slane %v866, %v984
    %vm986 = vcmask 326912
    %v987 = vsel %vm986, %v985, %v980
    %v988 = vadd.s32 %v922, 4294967256
    %v989 = vlaneseq
    %v990 = vshrl.u32 %v989, 7
    %v991 = vsub.s32 %v988, %v990
    %v992 = vrot.slane %v868, %v991
    %vm993 = vcmask 392512
    %v994 = vsel %vm993, %v992, %v987
    %v995 = vadd.s32 %v922, 4294967248
    %v996 = vlaneseq
    %v997 = vshrl.u32 %v996, 7
    %v998 = vsub.s32 %v995, %v997
    %v999 = vrot.slane %v870, %v998
    %vm1000 = vcmask 458112
    %v1001 = vsel %vm1000, %v999, %v994
    %v1002 = vadd.s32 %v922, 4294967240
    %v1003 = vlaneseq
    %v1004 = vshrl.u32 %v1003, 7
    %v1005 = vsub.s32 %v1002, %v1004
    %v1006 = vrot.slane %v872, %v1005
    %vm1007 = vcmask 523712
    %v1008 = vsel %vm1007, %v1006, %v1001
    %v1009 = vadd.s32 %v922, 4294967232
    %v1010 = vlaneseq
    %v1011 = vshrl.u32 %v1010, 7
    %v1012 = vsub.s32 %v1009, %v1011
    %v1013 = vrot.slane %v874, %v1012
    %vm1014 = vcmask 589312
    %v1015 = vsel %vm1014, %v1013, %v1008
    %v1016 = vadd.s32 %v922, 4294967224
    %v1017 = vlaneseq
    %v1018 = vshrl.u32 %v1017, 7
    %v1019 = vsub.s32 %v1016, %v1018
    %v1020 = vrot.slane %v876, %v1019
    %vm1021 = vcmask 654912
    %v1022 = vsel %vm1021, %v1020, %v1015
    %v1023 = vadd.s32 %v922, 4294967216
    %v1024 = vlaneseq
    %v1025 = vshrl.u32 %v1024, 7
    %v1026 = vsub.s32 %v1023, %v1025
    %v1027 = vrot.slane %v878, %v1026
    %vm1028 = vcmask 720512
    %v1029 = vsel %vm1028, %v1027, %v1022
    %v1030 = vadd.s32 %v922, 4294967208
    %v1031 = vlaneseq
    %v1032 = vshrl.u32 %v1031, 7
    %v1033 = vsub.s32 %v1030, %v1032
    %v1034 = vrot.slane %v880, %v1033
    %vm1035 = vcmask 786112
    %v1036 = vsel %vm1035, %v1034, %v1029
    %v1037 = vadd.s32 %v922, 4294967200
    %v1038 = vlaneseq
    %v1039 = vshrl.u32 %v1038, 7
    %v1040 = vsub.s32 %v1037, %v1039
    %v1041 = vrot.slane %v882, %v1040
    %vm1042 = vcmask 851712
    %v1043 = vsel %vm1042, %v1041, %v1036
    %v1044 = vadd.s32 %v922, 4294967192
    %v1045 = vlaneseq
    %v1046 = vshrl.u32 %v1045, 7
    %v1047 = vsub.s32 %v1044, %v1046
    %v1048 = vrot.slane %v884, %v1047
    %vm1049 = vcmask 917312
    %v1050 = vsel %vm1049, %v1048, %v1043
    %v1051 = vadd.s32 %v922, 4294967184
    %v1052 = vlaneseq
    %v1053 = vshrl.u32 %v1052, 7
    %v1054 = vsub.s32 %v1051, %v1053
    %v1055 = vrot.slane %v886, %v1054
    %vm1056 = vcmask 982912
    %v1057 = vsel %vm1056, %v1055, %v1050
    %v1058 = vadd.s32 %v922, 4294967176
    %v1059 = vlaneseq
    %v1060 = vshrl.u32 %v1059, 7
    %v1061 = vsub.s32 %v1058, %v1060
    %v1062 = vrot.slane %v888, %v1061
    %vm1063 = vcmask 1048512
    %v1064 = vsel %vm1063, %v1062, %v1057
    %v1065 = vlaneseq
    %v1066 = vshrl.u32 %v1065, 7
    %v1067 = vsub.s32 %v922, %v1066
    %v1068 = vrot.slane %v890, %v1067
    %v1069 = vlaneseq
    %v1070 = vshrl.u32 %v1069, 7
    %v1071 = vsub.s32 %v960, %v1070
    %v1072 = vrot.slane %v892, %v1071
    %v1073 = vsel %vm965, %v1072, %v1068
    %v1074 = vlaneseq
    %v1075 = vshrl.u32 %v1074, 7
    %v1076 = vsub.s32 %v967, %v1075
    %v1077 = vrot.slane %v894, %v1076
    %v1078 = vsel %vm972, %v1077, %v1073
    %v1079 = vlaneseq
    %v1080 = vshrl.u32 %v1079, 7
    %v1081 = vsub.s32 %v974, %v1080
    %v1082 = vrot.slane %v896, %v1081
    %v1083 = vsel %vm979, %v1082, %v1078
    %v1084 = vlaneseq
    %v1085 = vshrl.u32 %v1084, 7
    %v1086 = vsub.s32 %v981, %v1085
    %v1087 = vrot.slane %v898, %v1086
    %v1088 = vsel %vm986, %v1087, %v1083
    %v1089 = vlaneseq
    %v1090 = vshrl.u32 %v1089, 7
    %v1091 = vsub.s32 %v988, %v1090
    %v1092 = vrot.slane %v900, %v1091
    %v1093 = vsel %vm993, %v1092, %v1088
    %v1094 = vlaneseq
    %v1095 = vshrl.u32 %v1094, 7
    %v1096 = vsub.s32 %v995, %v1095
    %v1097 = vrot.slane %v902, %v1096
    %v1098 = vsel %vm1000, %v1097, %v1093
    %v1099 = vlaneseq
    %v1100 = vshrl.u32 %v1099, 7
    %v1101 = vsub.s32 %v1002, %v1100
    %v1102 = vrot.slane %v904, %v1101
    %v1103 = vsel %vm1007, %v1102, %v1098
    %v1104 = vlaneseq
    %v1105 = vshrl.u32 %v1104, 7
    %v1106 = vsub.s32 %v1009, %v1105
    %v1107 = vrot.slane %v906, %v1106
    %v1108 = vsel %vm1014, %v1107, %v1103
    %v1109 = vlaneseq
    %v1110 = vshrl.u32 %v1109, 7
    %v1111 = vsub.s32 %v1016, %v1110
    %v1112 = vrot.slane %v908, %v1111
    %v1113 = vsel %vm1021, %v1112, %v1108
    %v1114 = vlaneseq
    %v1115 = vshrl.u32 %v1114, 7
    %v1116 = vsub.s32 %v1023, %v1115
    %v1117 = vrot.slane %v910, %v1116
    %v1118 = vsel %vm1028, %v1117, %v1113
    %v1119 = vlaneseq
    %v1120 = vshrl.u32 %v1119, 7
    %v1121 = vsub.s32 %v1030, %v1120
    %v1122 = vrot.slane %v912, %v1121
    %v1123 = vsel %vm1035, %v1122, %v1118
    %v1124 = vlaneseq
    %v1125 = vshrl.u32 %v1124, 7
    %v1126 = vsub.s32 %v1037, %v1125
    %v1127 = vrot.slane %v914, %v1126
    %v1128 = vsel %vm1042, %v1127, %v1123
    %v1129 = vlaneseq
    %v1130 = vshrl.u32 %v1129, 7
    %v1131 = vsub.s32 %v1044, %v1130
    %v1132 = vrot.slane %v916, %v1131
    %v1133 = vsel %vm1049, %v1132, %v1128
    %v1134 = vlaneseq
    %v1135 = vshrl.u32 %v1134, 7
    %v1136 = vsub.s32 %v1051, %v1135
    %v1137 = vrot.slane %v918, %v1136
    %v1138 = vsel %vm1056, %v1137, %v1133
    %v1139 = vlaneseq
    %v1140 = vshrl.u32 %v1139, 7
    %v1141 = vsub.s32 %v1058, %v1140
    %v1142 = vrot.slane %v920, %v1141
    %v1143 = vsel %vm1063, %v1142, %v1138
    %vm1144 = vcmask 1041409
    %v1145 = vsel %vm1144, %v1143, %v1064
    %v1147 = vsel %vm923, %v1145, -1e+30
    %vm1148 = vcmask 1041408
    %v1149 = vsel %vm1148, %v1147, -inf
    %1150 = vmax.xlane.f32.xlu0 %v1149
    %v1151 = vpop.xlane.xlu0 %1150
    %v1152 = vsub.f32 %v1147, %v1151
    %v1153 = vmul.f32 %v1152, 1.442695
    %v1154 = vpow.pop %v1153
    %v1155 = vsel %vm1148, %v1154, 0.0
    %1156 = vadd.xlane.f32.xlu0 %v1155
    %v1157 = vpop.xlane.xlu0 %1156
    %v1158 = vrcp.pop %v1157
    %v1159 = vmul.f32 %v1154, %v1158
    %1160 = vst [vmem:[#allocation2] sm:$0x3] %v1159
    %v1161 = vadd.f32 %v57, %v1159
    %1162 = vst [vmem:[%s6] sm:$0x3] %v1161
    // Predicated region
    $region22: #{attention_forward.1} parent=1 // pred_check
      _
    $region23: #{attention_forward.1} parent=1 // pred_check_branch
      %1164 = sbr.rel (0) target = $region25
    $region24: #{attention_forward.1} parent=1 // pred_region
      %s1166 = ssub.s32 32, 32
      %1167 = vsyncadd [#allocation3], %s1166
      %s1169 = sshll.u32 [#allocation2], 4
      %s1170 = int_to_ptr.vmem [resolvable:$true] %s1169
      %1172 = dma.vmem_to_hbm [thread:$0]  %s1170, 32, %s5, [#allocation3]
    $region25: #{attention_forward.1} parent=1 // pred_fallthru
      _
    // Predicated region
    $region26: #{attention_forward.1} parent=1 // pred_check
      _
    $region27: #{attention_forward.1} parent=1 // pred_check_branch
      %1174 = sbr.rel (0) target = $region29
    $region28: #{attention_forward.1} parent=1 // pred_region
      _
    $region29: #{attention_forward.1} parent=1 // pred_fallthru
      _
    // Predicated region
    $region30: #{attention_forward.1} parent=1 // pred_check
      _
    $region31: #{attention_forward.1} parent=1 // pred_check_branch
      %1176 = sbr.rel (0) target = $region33
    $region32: #{attention_forward.1} parent=1 // pred_region
      %1177 = dma.done [#allocation3], 32
    $region33: #{attention_forward.1} parent=1 // pred_fallthru
      _
    // Predicated region
    $region34: #{attention_forward.1} parent=1 // pred_check
      _
    $region35: #{attention_forward.1} parent=1 // pred_check_branch
      %1179 = sbr.rel (0) target = $region37
    $region36: #{attention_forward.1} parent=1 // pred_region
      _
    $region37: #{attention_forward.1} parent=1 // pred_fallthru
      _
    %1180 = vsyncpa [#allocation3], 1

</llo_original>
